<compile_context>
chip_gen: v6e
topology: v6e:2x2x1
jax: 0.10.0
libtpu: 0.0.40
codegen_flags: <defaults>
</compile_context>

<pallas_src>
import jax
import jax.numpy as jnp
from jax.experimental import pallas as pl
from jax.experimental.pallas import tpu as pltpu

_LANE = 128
_SUBLANE = 8


def _round_up(x, m):
    return ((x + m - 1) // m) * m


def _cdiv(a, b):
    return (a + b - 1) // b


def _vmem_budget_bytes():
    """Generation-aware VMEM budget, leaving headroom for Mosaic internal scratch."""
    try:
        cap = int(pltpu.get_tpu_info().vmem_capacity_bytes)
        if not cap:
            raise ValueError
    except Exception:
        cap = 64 * 1024 * 1024            # conservative: v7x per-TensorCore capacity
    return (cap * 3) // 4                 # ~48 MiB on v7x, ~96 MiB on v5e/v6e


# --------------------------------------------------------------------------------------
# Kernels
# --------------------------------------------------------------------------------------
def _fullk_kernel(x_ref, wt_ref, b_ref, o_ref):
    """Full-K path: one MXU panel matmul per (tm, tn) output tile, fused bias + ReLU."""
    y = jnp.dot(x_ref[...], wt_ref[...], preferred_element_type=jnp.float32)
    o_ref[...] = jnp.maximum(y + b_ref[...], 0.0).astype(o_ref.dtype)


def _kred_kernel(x_ref, wt_ref, b_ref, o_ref, acc_ref):
    """K-reduction path: fp32 VMEM accumulator across grid axis 2 (reduction last)."""
    k = pl.program_id(2)

    @pl.when(k == 0)
    def _():
        acc_ref[...] = jnp.zeros_like(acc_ref)

    acc_ref[...] += jnp.dot(x_ref[...], wt_ref[...],
                            preferred_element_type=jnp.float32)

    @pl.when(k == pl.num_programs(2) - 1)
    def _():
        o_ref[...] = jnp.maximum(acc_ref[...] + b_ref[...], 0.0).astype(o_ref.dtype)


# --------------------------------------------------------------------------------------
# Tile / schedule selection
# --------------------------------------------------------------------------------------
# Largest (best arithmetic intensity) first; the first configuration that fits VMEM wins.
_TILE_CANDIDATES = ((1024, 2048), (512, 1024), (512, 512), (256, 512),
                    (256, 256), (128, 256), (128, 128))


def _pick_tk(H):
    for tk in (2048, 1024, 512, 256, 128):
        if tk <= H and H % tk == 0:
            return tk
    if H <= 2048:
        return H                      # single K step, no padding needed
    return 512                        # requires explicit zero-padding of K (rare shapes)


def _select_config(M, H, I, in_isz, out_isz, budget):
    """Returns (tm, tn, tk, full_k)."""
    for tm_t, tn_t in _TILE_CANDIDATES:
        tm = M if M < tm_t else tm_t
        tn = I if I < tn_t else tn_t
        bias_bytes = 2 * tn * 4
        out_bytes = 2 * tm * tn * out_isz
        # (a) full-K panel: no reduction axis, no accumulator, x read once per M tile.
        fullk_bytes = 2 * (tm * H + H * tn) * in_isz + out_bytes + bias_bytes
        if fullk_bytes <= budget:
            return tm, tn, H, True
        # (b) K-reduction with a large tk and an fp32 accumulator.
        tk = _pick_tk(H)
        kred_bytes = (2 * (tm * tk + tk * tn) * in_isz + out_bytes + bias_bytes
                      + tm * tn * 4)
        if kred_bytes <= budget:
            return tm, tn, tk, False
    # Minimal safe fallback (should not trigger for realistic transformer sizes).
    return min(M, 128), min(I, 128), min(H, 512), False


def _ensure_two_parallel_tiles(M, I, tm, tn):
    """v7x has 2 TensorCores: keep >= 2 parallel grid points when the problem allows."""
    if _cdiv(M, tm) * _cdiv(I, tn) >= 2:
        return tm, tn
    if I >= 256 and tn >= 256:
        return tm, _round_up(_cdiv(I, 2), _LANE)
    if M >= 256 and tm >= 256:
        return _round_up(_cdiv(M, 2), _SUBLANE), tn
    return tm, tn


# --------------------------------------------------------------------------------------
# Host-side API
# --------------------------------------------------------------------------------------
def prepare_intermediate_params(weight, bias, compute_dtype=jnp.bfloat16):
    """One-time parameter prep (call at load time, NOT per forward).

    weight: (I, H) in nn.Linear layout; bias: (I,).
    Returns (wt, b2): pre-transposed compute-dtype weight (H, I) and fp32 bias (1, I).
    """
    wt = jnp.asarray(weight).T.astype(compute_dtype)
    b2 = jnp.asarray(bias).reshape(1, -1).astype(jnp.float32)
    return wt, b2


def intermediate_forward(hidden_states, wt, b2, *, out_dtype=None):
    """y = relu(hidden_states @ wt + b2).

    hidden_states: [..., H]; wt: (H, I) pre-transposed compute-dtype weight; b2: (1, I) fp32.
    """
    orig_shape = hidden_states.shape
    H = orig_shape[-1]
    Hw, I = wt.shape
    assert Hw == H, f"weight/activation mismatch: {Hw} vs {H}"
    if out_dtype is None:
        out_dtype = hidden_states.dtype

    x = hidden_states.reshape(-1, H).astype(wt.dtype)   # no-op cast when model is already bf16
    M = x.shape[0]

    in_isz = jnp.dtype(wt.dtype).itemsize
    out_isz = jnp.dtype(out_dtype).itemsize
    budget = _vmem_budget_bytes()

    tm, tn, tk, full_k = _select_config(M, H, I, in_isz, out_isz, budget)
    tm, tn = _ensure_two_parallel_tiles(M, I, tm, tn)

    mi, nj = _cdiv(M, tm), _cdiv(I, tn)
    flops = 2 * M * I * H
    if full_k:
        bytes_accessed = (M * H * in_isz            # activations: read once per M tile
                          + mi * H * I * in_isz     # weights: re-read per M tile
                          + M * I * out_isz + I * 4)
    else:
        bytes_accessed = (nj * M * H * in_isz       # activations: re-read per N tile
                          + mi * H * I * in_isz     # weights: re-read per M tile
                          + M * I * out_isz + I * 4)
    cost = pl.CostEstimate(flops=flops, transcendentals=0,
                           bytes_accessed=int(bytes_accessed))

    if full_k:
        out = pl.pallas_call(
            _fullk_kernel,
            out_shape=jax.ShapeDtypeStruct((M, I), out_dtype),
            grid_spec=pltpu.PrefetchScalarGridSpec(
                num_scalar_prefetch=0,
                grid=(mi, nj),
                in_specs=[
                    pl.BlockSpec((tm, H), lambda i, j: (i, 0)),    # x: invariant in j
                    pl.BlockSpec((H, tn), lambda i, j: (0, j)),    # pre-transposed weight
                    pl.BlockSpec((1, tn), lambda i, j: (0, j)),    # bias (fp32)
                ],
                out_specs=pl.BlockSpec((tm, tn), lambda i, j: (i, j)),
            ),
            compiler_params=pltpu.CompilerParams(
                dimension_semantics=("parallel", "parallel"),
                vmem_limit_bytes=int(budget),
            ),
            cost_estimate=cost,
        )(x, wt, b2)
    else:
        # Large-H fallback: K reduction over grid axis 2. Zero-pad K only if tk doesn't divide H
        # (rare; typical transformer H is a multiple of 128, so no padding happens).
        Kp = _round_up(H, tk)
        if Kp != H:
            x = jnp.pad(x, ((0, 0), (0, Kp - H)))
            wt = jnp.pad(wt, ((0, Kp - H), (0, 0)))
        out = pl.pallas_call(
            _kred_kernel,
            out_shape=jax.ShapeDtypeStruct((M, I), out_dtype),
            grid_spec=pltpu.PrefetchScalarGridSpec(
                num_scalar_prefetch=0,
                grid=(mi, nj, Kp // tk),
                in_specs=[
                    pl.BlockSpec((tm, tk), lambda i, j, k: (i, k)),
                    pl.BlockSpec((tk, tn), lambda i, j, k: (k, j)),
                    pl.BlockSpec((1, tn), lambda i, j, k: (0, j)),
                ],
                out_specs=pl.BlockSpec((tm, tn), lambda i, j, k: (i, j)),
                scratch_shapes=[pltpu.VMEM((tm, tn), jnp.float32)],
            ),
            compiler_params=pltpu.CompilerParams(
                dimension_semantics=("parallel", "parallel", "arbitrary"),
                vmem_limit_bytes=int(budget),
            ),
            cost_estimate=cost,
        )(x, wt, b2)

    return out.reshape(*orig_shape[:-1], I)


def intermediate_apply(hidden_states, weight, bias, *, compute_dtype=jnp.bfloat16):
    """Convenience wrapper matching the PyTorch module signature (weight in (I, H) layout).
    For hot loops, call prepare_intermediate_params() once and reuse intermediate_forward()."""
    wt, b2 = prepare_intermediate_params(weight, bias, compute_dtype)
    return intermediate_forward(hidden_states, wt, b2)


if __name__ == "__main__":
    B, S, H, I = 2, 8, 32, 64
    key = jax.random.PRNGKey(0)
    kx, kw, kb = jax.random.split(key, 3)

    hidden_states = jax.random.normal(kx, (B, S, H), jnp.float32)
    weight = jax.random.normal(kw, (I, H), jnp.float32) * 0.02   # nn.Linear weight (out, in)
    bias = jax.random.normal(kb, (I,), jnp.float32) * 0.02

    # bf16 MXU path (production config). Parameter prep is hoisted out of the forward pass.
    wt_bf16, b2 = prepare_intermediate_params(weight, bias, jnp.bfloat16)
    out = jax.block_until_ready(intermediate_forward(hidden_states, wt_bf16, b2))
    assert out.shape == (B, S, I)

    ref_bf16 = jax.nn.relu(
        jnp.einsum("bsh,hi->bsi",
                   hidden_states.astype(jnp.bfloat16), weight.T.astype(jnp.bfloat16),
                   preferred_element_type=jnp.float32) + bias)
    assert jnp.allclose(out, ref_bf16, rtol=1e-2, atol=1e-2), "bf16 mismatch vs reference"

    # fp32 path sanity check (exact module semantics).
    wt_f32, b2_f32 = prepare_intermediate_params(weight, bias, jnp.float32)
    out32 = jax.block_until_ready(intermediate_forward(hidden_states, wt_f32, b2_f32))
    ref32 = jax.nn.relu(jnp.einsum("bsh,hi->bsi", hidden_states, weight.T) + bias)
    assert jnp.allclose(out32, ref32, rtol=1e-4, atol=1e-4), "fp32 mismatch vs reference"

    print("KERNEL_OK")
</pallas_src>

<mosaic_0001>
module attributes {stable_mosaic.version = 11 : i64} {
  func.func @_fullk_kernel(%arg0: i32, %arg1: i32, %arg2: memref<16x32xbf16, #tpu.memory_space<vmem>>, %arg3: memref<32x64xbf16, #tpu.memory_space<vmem>>, %arg4: memref<1x64xf32, #tpu.memory_space<vmem>>, %arg5: memref<16x64xf32, #tpu.memory_space<vmem>>) attributes {dimension_semantics = [#tpu.dimension_semantics<parallel>, #tpu.dimension_semantics<parallel>], iteration_bounds = array<i64: 1, 1>, scalar_prefetch = 0 : i64, scratch_operands = 0 : i64, tpu.core_type = #tpu.core_type<tc>, window_params = [{transform_indices = @transform_0, window_bounds = array<i64: 16, 32>}, {transform_indices = @transform_1, window_bounds = array<i64: 32, 64>}, {transform_indices = @transform_2, window_bounds = array<i64: 1, 64>}, {transform_indices = @transform_3, window_bounds = array<i64: 16, 64>}]} {
    %c0 = arith.constant 0 : index
    %c0_0 = arith.constant 0 : index
    %0 = vector.load %arg2[%c0, %c0_0] : memref<16x32xbf16, #tpu.memory_space<vmem>>, vector<16x32xbf16>
    %c0_1 = arith.constant 0 : index
    %c0_2 = arith.constant 0 : index
    %1 = vector.load %arg3[%c0_1, %c0_2] : memref<32x64xbf16, #tpu.memory_space<vmem>>, vector<32x64xbf16>
    %cst = arith.constant dense<0.000000e+00> : vector<16x64xf32>
    %2 = tpu.matmul %0, %1, %cst {dimension_numbers = #tpu.dot_dimension_numbers<[1], [0], [0], [1], [0, 0, 1, 1], [], []>} : vector<16x32xbf16>, vector<32x64xbf16>, vector<16x64xf32> -> vector<16x64xf32>
    %c0_3 = arith.constant 0 : index
    %c0_4 = arith.constant 0 : index
    %3 = vector.load %arg4[%c0_3, %c0_4] : memref<1x64xf32, #tpu.memory_space<vmem>>, vector<1x64xf32>
    %4 = vector.broadcast %3 : vector<1x64xf32> to vector<16x64xf32>
    %5 = arith.addf %2, %4 : vector<16x64xf32>
    %cst_5 = arith.constant 0.000000e+00 : f32
    %6 = vector.broadcast %cst_5 : f32 to vector<16x64xf32>
    %7 = arith.maximumf %5, %6 : vector<16x64xf32>
    %c0_6 = arith.constant 0 : index
    %c0_7 = arith.constant 0 : index
    %8 = vector.load %arg5[%c0_6, %c0_7] : memref<16x64xf32, #tpu.memory_space<vmem>>, vector<16x64xf32>
    tpu.vector_store %arg5[%c0_6, %c0_7], %7 {strides = array<i32>} : memref<16x64xf32, #tpu.memory_space<vmem>>, vector<16x64xf32>,
    return
  }
  func.func @transform_0(%arg0: i32, %arg1: i32) -> (i32, i32) {
    %c0_i32 = arith.constant 0 : i32
    %c0_i32_0 = arith.constant 0 : i32
    return %arg0, %c0_i32 : i32, i32
  }
  func.func @transform_1(%arg0: i32, %arg1: i32) -> (i32, i32) {
    %c0_i32 = arith.constant 0 : i32
    %c0_i32_0 = arith.constant 0 : i32
    return %c0_i32, %arg1 : i32, i32
  }
  func.func @transform_2(%arg0: i32, %arg1: i32) -> (i32, i32) {
    %c0_i32 = arith.constant 0 : i32
    %c0_i32_0 = arith.constant 0 : i32
    return %c0_i32, %arg1 : i32, i32
  }
  func.func @transform_3(%arg0: i32, %arg1: i32) -> (i32, i32) {
    %c0_i32 = arith.constant 0 : i32
    return %arg0, %arg1 : i32, i32
  }
}

</mosaic_0001>

<llo_original>
// kernel: tpu_custom_call.1
$region0: #{tpu_custom_call.1}
  #allocation0 [shape = 'u32[]', space=smem, size = 0x4, offset = 0x4, fixed_abs, tag = 'smem constant byte address 0x4 - core index']
  #allocation1 [shape = 'u32[144,128]{1,0:T(1,128)}', space=vmem, size = 0x12000, scoped, tag = 'internal scratch']
  %s0 = inlined_call_operand.hbm [shape: bf16[16,32], index: 0, kind: input, shape index: {}]
  %s1 = inlined_call_operand.hbm [shape: bf16[32,64], index: 1, kind: input, shape index: {}]
  %s2 = inlined_call_operand.vmem [shape: f32[1,64], index: 2, kind: input, shape index: {}]
  %s3 = inlined_call_operand.hbm [shape: f32[16,64], index: 3, kind: output, shape index: {}]
  %s4 = sld [smem:[#allocation0]]
  $region30: #{tpu_custom_call.1} parent=0
    _
  %s6 = ssub.s32 1, %s4
  %s7 = scalar_select 0, %s6, %s4
  $region1: #{tpu_custom_call.1} parent=0
    #allocation2 [shape = 'u8[4096]{0}', space=vmem, size = 0x1000, scoped, tag = 'input window, operand 0, single buffered']
    #allocation3 [shape = 's32[1]{0}', space=sflag, size = 0x4, scoped, tag = 'scoped memory for tpu_custom_call.1']
    #allocation4 [shape = 's32[1]{0}', space=sflag, size = 0x4, scoped, tag = 'scoped memory for tpu_custom_call.1']
    #allocation5 [shape = 'u8[8192]{0}', space=vmem, size = 0x2000, scoped, tag = 'input window, operand 1, single buffered']
    #allocation6 [shape = 's32[1]{0}', space=sflag, size = 0x4, scoped, tag = 'scoped memory for tpu_custom_call.1']
    #allocation7 [shape = 'u8[8192]{0}', space=vmem, size = 0x2000, scoped, tag = 'output window, operand 0, single buffered']
    %8 = vsyncpa [#allocation3], 0
    %9 = vsyncpa [#allocation6], 0
    %10 = vsyncpa [#allocation4], 0
    // Predicated region
    $region2: #{tpu_custom_call.1} parent=1 // pred_check
      _
    $region3: #{tpu_custom_call.1} parent=1 // pred_check_branch
      %12 = sbr.rel (0) target = $region5
    $region4: #{tpu_custom_call.1} parent=1 // pred_region
      %s14 = ssub.s32 128, 128
      %15 = vsyncadd [#allocation3], %s14
      %s16 = sshll.u32 [#allocation2], 4
      %s17 = int_to_ptr.vmem [resolvable:$true] %s16
      %22 = dma.hbm_to_vmem [thread:$0]  %s0, 128, %s17, [#allocation3], 64, 64, 4
    $region5: #{tpu_custom_call.1} parent=1 // pred_fallthru
      _
    // Predicated region
    $region6: #{tpu_custom_call.1} parent=1 // pred_check
      _
    $region7: #{tpu_custom_call.1} parent=1 // pred_check_branch
      %24 = sbr.rel (0) target = $region9
    $region8: #{tpu_custom_call.1} parent=1 // pred_region
      %s26 = ssub.s32 256, 256
      %27 = vsyncadd [#allocation6], %s26
      %s28 = sshll.u32 [#allocation5], 4
      %s29 = int_to_ptr.vmem [resolvable:$true] %s28
      %34 = dma.hbm_to_vmem [thread:$0]  %s1, 256, %s29, [#allocation6], 64, 64, 4
    $region9: #{tpu_custom_call.1} parent=1 // pred_fallthru
      _
    // Predicated region
    $region10: #{tpu_custom_call.1} parent=1 // pred_check
      _
    $region11: #{tpu_custom_call.1} parent=1 // pred_check_branch
      %36 = sbr.rel (0) target = $region13
    $region12: #{tpu_custom_call.1} parent=1 // pred_region
      _
    $region13: #{tpu_custom_call.1} parent=1 // pred_fallthru
      _
    // Predicated region
    $region14: #{tpu_custom_call.1} parent=1 // pred_check
      _
    $region15: #{tpu_custom_call.1} parent=1 // pred_check_branch
      %38 = sbr.rel (0) target = $region17
    $region16: #{tpu_custom_call.1} parent=1 // pred_region
      %39 = dma.done [#allocation3], 128
    $region17: #{tpu_custom_call.1} parent=1 // pred_fallthru
      _
    // Predicated region
    $region18: #{tpu_custom_call.1} parent=1 // pred_check
      _
    $region19: #{tpu_custom_call.1} parent=1 // pred_check_branch
      %41 = sbr.rel (0) target = $region21
    $region20: #{tpu_custom_call.1} parent=1 // pred_region
      %42 = dma.done [#allocation6], 256
    $region21: #{tpu_custom_call.1} parent=1 // pred_fallthru
      _
    %v44 = vld [vmem:[#allocation2] sm:$0xf]
    %v45 = vld [vmem:[#allocation2 + $0x4] sm:$0xf]
    %v46 = vld [vmem:[#allocation5] sm:$0xf]
    %v47 = vld [vmem:[#allocation5 + $0x4] sm:$0xf]
    %v48 = vld [vmem:[#allocation5 + $0x8] sm:$0xf]
    %v49 = vld [vmem:[#allocation5 + $0xc] sm:$0xf]
    %v50 = vld [vmem:[%s2] sm:$0x1]
    %v52 = vlaneseq
    %v53 = vshrl.u32 %v52, 7
    %v54 = vsub.s32 0, %v53
    %v55 = vrot.slane %v50, %v54
    %v59 = vunpack.c.l.b16 %v44
    %v60 = vunpack.c.l.b16 %v45
    %v61 = vpack.c.b16 %v60, %v59
    %v66 = vunpack.c.l.b16 %v46
    %v67 = vunpack.c.l.b16 %v47
    %v68 = vunpack.c.l.b16 %v48
    %v69 = vunpack.c.l.b16 %v49
    %v70 = vpack.c.b16 %v67, %v66
    %v71 = vpack.c.b16 %v69, %v68
    %vm74 = vcmask 261120
    %v76 = vsel %vm74, %v61, 0
    %78 = vmatprep.subr.bf16.mxu0 0
    %79 = vmatpush1.bf16.msra.mxu0 0
    %80 = vmatprep.subr.bf16.mxu0 0
    %81 = vmatpush1.bf16.msra.mxu0 0
    %82 = vmatprep.subr.bf16.mxu0 0
    %83 = vmatpush1.bf16.msra.mxu0 0
    %84 = vmatprep.subr.bf16.mxu0 0
    %85 = vmatpush1.bf16.msra.mxu0 0
    %86 = vmatprep.subr.bf16.mxu0 0
    %87 = vmatpush1.bf16.msra.mxu0 0
    %88 = vmatprep.subr.bf16.mxu0 0
    %89 = vmatpush1.bf16.msra.mxu0 0
    %90 = vmatprep.subr.bf16.mxu0 0
    %91 = vmatpush1.bf16.msra.mxu0 %v71
    %92 = vmatprep.subr.bf16.mxu0 0
    %93 = vmatpush1.bf16.msra.mxu0 %v70
    %94 = vmatprep.subr.bf16.mxu0 0
    %95 = vmatpush2.bf16.msra.mxu0 0
    %96 = vmatprep.subr.bf16.mxu0 0
    %97 = vmatpush2.bf16.msra.mxu0 0
    %98 = vmatprep.subr.bf16.mxu0 0
    %99 = vmatpush2.bf16.msra.mxu0 0
    %100 = vmatprep.subr.bf16.mxu0 0
    %101 = vmatpush2.bf16.msra.mxu0 0
    %102 = vmatprep.subr.bf16.mxu0 0
    %103 = vmatpush2.bf16.msra.mxu0 0
    %104 = vmatprep.subr.bf16.mxu0 0
    %105 = vmatpush2.bf16.msra.mxu0 0
    %106 = vmatprep.subr.bf16.mxu0 0
    %107 = vmatpush2.bf16.msra.mxu0 0
    %108 = vmatprep.subr.bf16.mxu0 0
    %109 = vmatpush2.bf16.msra.mxu0 0
    %110 = vmatprep.mubr.bf16.mxu0 0
    %111 = vmatmul.mubr.bf16.gmra.mxu0 %v76
    %v112 = vpop.f32.mrf.mxu0
    %v113 = vadd.f32 %v55, %v112
    %v114 = vpop.f32.mrf.mxu0
    %v115 = vpop.f32.mrf.mxu0
    %v116 = vadd.f32 %v55, %v115
    %v117 = vpop.f32.mrf.mxu0
    %118 = vdwg.mxu0
    %v119 = vmax.f32 %v113, 0.0
    %v120 = vmax.f32 %v116, 0.0
    %vm121 = vcmask 523264
    %122 = vst.msk [vmem:[#allocation7] sm:$0xff] %vm121, %v119
    %123 = vst.msk [vmem:[#allocation7 + $0x8] sm:$0xff] %vm121, %v120
    // Predicated region
    $region22: #{tpu_custom_call.1} parent=1 // pred_check
      _
    $region23: #{tpu_custom_call.1} parent=1 // pred_check_branch
      %125 = sbr.rel (0) target = $region25
    $region24: #{tpu_custom_call.1} parent=1 // pred_region
      %s127 = ssub.s32 256, 256
      %128 = vsyncadd [#allocation4], %s127
      %s129 = sshll.u32 [#allocation7], 4
      %s130 = int_to_ptr.vmem [resolvable:$true] %s129
      %135 = dma.vmem_to_hbm [thread:$0]  %s130, 256, %s3, [#allocation4], 128, 128, 8
    $region25: #{tpu_custom_call.1} parent=1 // pred_fallthru
      _
    // Predicated region
    $region26: #{tpu_custom_call.1} parent=1 // pred_check
      _
    $region27: #{tpu_custom_call.1} parent=1 // pred_check_branch
      %137 = sbr.rel (0) target = $region29
    $region28: #{tpu_custom_call.1} parent=1 // pred_region
      %138 = dma.done [#allocation4], 256
    $region29: #{tpu_custom_call.1} parent=1 // pred_fallthru
      _
    %139 = vsyncpa [#allocation3], 1
    %140 = vsyncpa [#allocation6], 1
    %141 = vsyncpa [#allocation4], 1

</llo_original>
